<compile_context>
chip_gen: v7x
topology: tpu7x:2x2x1
jax: 0.10.0
libtpu: 0.0.40
codegen_flags: <defaults>
</compile_context>

<pallas_src>
import jax
import jax.numpy as jnp
from jax.experimental import pallas as pl
from jax.experimental.pallas import tpu as pltpu

F32 = jnp.float32
BF16 = jnp.bfloat16


def _compute_vmem_limit():
    # Generation-aware scoped-VMEM budget: 3/4 of physical, capped at 100 MiB.
    try:
        cap = pltpu.get_tpu_info().vmem_capacity_bytes
        return int(min(cap * 3 // 4, 100 * 1024 * 1024))
    except Exception:
        return 64 * 1024 * 1024


_VMEM_LIMIT = _compute_vmem_limit()


def _pick_tile(n, candidates):
    for c in candidates:
        if c <= n and n % c == 0:
            return c
    return n


def _full_spec(a):
    nd = a.ndim
    return pl.BlockSpec(a.shape, lambda *_, nd=nd: (0,) * nd)


# -------------------------------------------------- hoisted input projection --
def linear_kernel(x_ref, w_ref, b_ref, o_ref):
    """o = x @ w + b  (bf16 operands, f32 accumulate)."""
    o_ref[...] = (jnp.dot(x_ref[...], w_ref[...],
                          preferred_element_type=jnp.float32) + b_ref[...])


def run_input_proj(x2, w_stack, b_stack):
    """[N,K] x [D,K,M] + [D,1,M] -> [D,N,M] f32, tiled over (direction, rows)."""
    N, K = x2.shape
    D, _, M = w_stack.shape
    TR = _pick_tile(N, (1024, 512, 256, 128, 64, 32, 16, 8))
    if TR == N and N > 2048:          # no clean divisor: pad instead of one block
        TR = 512
    Np = ((N + TR - 1) // TR) * TR
    if Np != N:
        x2 = jnp.pad(x2, ((0, Np - N), (0, 0)))
    out = pl.pallas_call(
        linear_kernel,
        grid=(D, Np // TR),
        in_specs=[pl.BlockSpec((TR, K), lambda d, i: (i, 0)),
                  pl.BlockSpec((None, K, M), lambda d, i: (d, 0, 0)),
                  pl.BlockSpec((None, 1, M), lambda d, i: (d, 0, 0))],
        out_specs=pl.BlockSpec((None, TR, M), lambda d, i: (d, i, 0)),
        out_shape=jax.ShapeDtypeStruct((D, Np, M), F32),
        compiler_params=pltpu.CompilerParams(
            dimension_semantics=("parallel", "parallel"),
            vmem_limit_bytes=_VMEM_LIMIT),
    )(x2, w_stack, b_stack)
    return out[:, :N, :] if Np != N else out


# ------------------------------------------------------------------ encoder --
def encoder_kernel(gi_ref, mask_ref, whh_ref, bhh_ref, mem_ref, hfin_ref, h_sc):
    """One S-chunk of one direction of the bidirectional GRU.

    gi_ref   : [SC, B, 3H]  precomputed x@W_ih + b_ih for this direction/chunk
    mask_ref : [SC, B, 1]   1.0 where t < src_len else 0.0
    mem_ref  : [SC, B, H]   bf16 outputs for this direction (0 at padded pos.)
    hfin_ref : [B, H]       final hidden of this direction (resident over S)
    h_sc     : [B, H]       hidden state carried across S-chunks
    """
    d = pl.program_id(0)
    s = pl.program_id(1)
    SC, _, _ = gi_ref.shape
    H = whh_ref.shape[0]

    @pl.when(s == 0)
    def _():
        h_sc[...] = jnp.zeros_like(h_sc)

    whh = whh_ref[...]
    bhh = bhh_ref[...]

    def body(i, h):
        # forward direction walks i, backward direction walks SC-1-i
        li = i * (1 - d) + (SC - 1 - i) * d
        gi = gi_ref[li]                                  # [B, 3H]
        m = mask_ref[li]                                 # [B, 1]
        gh = jnp.dot(h.astype(BF16), whh,
                     preferred_element_type=jnp.float32) + bhh
        r = jax.nn.sigmoid(gi[:, :H] + gh[:, :H])
        z = jax.nn.sigmoid(gi[:, H:2 * H] + gh[:, H:2 * H])
        n = jnp.tanh(gi[:, 2 * H:] + r * gh[:, 2 * H:])
        h_new = (1.0 - z) * n + z * h
        valid = m > 0.5
        h_next = jnp.where(valid, h_new, h)              # freeze after last token
        mem_ref[li] = jnp.where(valid, h_new, 0.0).astype(mem_ref.dtype)
        return h_next

    h = jax.lax.fori_loop(0, SC, body, h_sc[...])
    h_sc[...] = h
    hfin_ref[...] = h


def run_encoder(gi, mask, whh, bhh):
    D, S, B, G = gi.shape
    H = whh.shape[1]
    SC = _pick_tile(S, (128, 64, 32, 16, 8))
    nS = S // SC

    def s_idx(d, s):
        return (1 - d) * s + d * (nS - 1 - s)

    in_specs = [
        pl.BlockSpec((None, SC, B, G), lambda d, s: (d, s_idx(d, s), 0, 0)),
        pl.BlockSpec((SC, B, 1), lambda d, s: (s_idx(d, s), 0, 0)),
        pl.BlockSpec((None, H, G), lambda d, s: (d, 0, 0)),
        pl.BlockSpec((None, 1, G), lambda d, s: (d, 0, 0)),
    ]
    out_specs = (
        pl.BlockSpec((None, SC, B, H), lambda d, s: (d, s_idx(d, s), 0, 0)),
        pl.BlockSpec((None, B, H), lambda d, s: (d, 0, 0)),
    )
    out_shapes = (jax.ShapeDtypeStruct((D, S, B, H), BF16),
                  jax.ShapeDtypeStruct((D, B, H), F32))
    return pl.pallas_call(
        encoder_kernel,
        grid=(D, nS),
        in_specs=in_specs,
        out_specs=out_specs,
        out_shape=out_shapes,
        scratch_shapes=[pltpu.VMEM((B, H), F32)],
        compiler_params=pltpu.CompilerParams(
            # directions are independent chains -> core-parallel on v7x;
            # the S-chunk axis carries the hidden state -> arbitrary.
            dimension_semantics=("parallel", "arbitrary"),
            vmem_limit_bytes=_VMEM_LIMIT),
    )(gi, mask, whh, bhh)


# ---------------------------------------------------- decoder: GRU recurrence --
def dec_gru_kernel(gi_ref, enc_final_ref, wb_ref, bb_ref, whh_ref, bhh_ref,
                   h_all_ref):
    """Whole teacher-forced decoder GRU recurrence in one ungridded kernel."""
    T, _, _ = gi_ref.shape
    Hd = whh_ref.shape[0]
    whh = whh_ref[...]
    bhh = bhh_ref[...]
    # bridge == 'dense': h_0 = Linear(encoder_final_state)
    h0 = (jnp.dot(enc_final_ref[...].astype(BF16), wb_ref[...],
                  preferred_element_type=jnp.float32) + bb_ref[...])

    def body(t, h):
        gi = gi_ref[t]                                   # [B, 3Hd]
        gh = jnp.dot(h.astype(BF16), whh,
                     preferred_element_type=jnp.float32) + bhh
        r = jax.nn.sigmoid(gi[:, :Hd] + gh[:, :Hd])
        z = jax.nn.sigmoid(gi[:, Hd:2 * Hd] + gh[:, Hd:2 * Hd])
        n = jnp.tanh(gi[:, 2 * Hd:] + r * gh[:, 2 * Hd:])
        h_new = (1.0 - z) * n + z * h
        h_all_ref[t] = h_new
        return h_new

    jax.lax.fori_loop(0, T, body, h0)


def run_dec_gru(gi_dec, enc_final, bridge_w, bridge_b, dec_whh, dec_bhh):
    T, B, _ = gi_dec.shape
    Hd = dec_whh.shape[0]
    return pl.pallas_call(
        dec_gru_kernel,
        out_shape=jax.ShapeDtypeStruct((T, B, Hd), F32),
        compiler_params=pltpu.CompilerParams(vmem_limit_bytes=_VMEM_LIMIT),
    )(gi_dec, enc_final, bridge_w, bridge_b, dec_whh, dec_bhh)


# --------------------------------------- attention (hoisted, batched over T) --
def attn_kernel(h_ref, mem_ref, mask_ref, wa_ref, w1c_ref, w1h_ref, b1_ref,
                attn_ref, hid1_ref):
    """attn = masked_softmax((h W_a) . mem); hid1 = [ctx ; h] @ W1 + b1.

    h_ref  : [Tc, B, Hd] f32   decoder hiddens (time-major chunk)
    mem    : [B, S, M]  bf16   encoder memory bank (resident across chunks)
    outputs (batch-major): attn [B, Tc, S] f32, hid1 [B, Tc, Hd] bf16
    """
    mem = mem_ref[...]
    h_bt = jnp.transpose(h_ref[...], (1, 0, 2)).astype(BF16)      # [B,Tc,Hd]

    feat = jnp.einsum('bth,hm->btm', h_bt, wa_ref[...],
                      preferred_element_type=jnp.float32)          # [B,Tc,M]
    scores = jnp.einsum('btm,bsm->bts', feat.astype(BF16), mem,
                        preferred_element_type=jnp.float32)        # [B,Tc,S]
    mask = mask_ref[...]                                           # [B,1,S]
    scores = jnp.where(mask > 0.5, scores, -1e9)                   # mask before max
    smax = jnp.max(scores, axis=-1, keepdims=True)
    e = jnp.exp(scores - smax) * mask
    denom = jnp.sum(e, axis=-1, keepdims=True) + 1e-12
    attn = e * (1.0 / denom)                                       # exact normalize
    attn_ref[...] = attn

    ctx = jnp.einsum('bts,bsm->btm', attn.astype(BF16), mem,
                     preferred_element_type=jnp.float32)           # [B,Tc,M]
    hid1 = (jnp.einsum('btm,mk->btk', ctx.astype(BF16), w1c_ref[...],
                       preferred_element_type=jnp.float32)
            + jnp.einsum('bth,hk->btk', h_bt, w1h_ref[...],
                         preferred_element_type=jnp.float32)
            + b1_ref[...])
    hid1_ref[...] = hid1.astype(hid1_ref.dtype)


def run_attention(h_all, memory_bank, src_mask3, attn_w, w1c, w1h, b1):
    T, B, Hd = h_all.shape
    _, S, M = memory_bank.shape
    Tc = _pick_tile(T, (64, 32, 16, 8))
    consts = [memory_bank, src_mask3, attn_w, w1c, w1h, b1]
    in_specs = ([pl.BlockSpec((Tc, B, Hd), lambda i: (i, 0, 0))]
                + [_full_spec(a) for a in consts])
    out_specs = (pl.BlockSpec((B, Tc, S), lambda i: (0, i, 0)),
                 pl.BlockSpec((B, Tc, Hd), lambda i: (0, i, 0)))
    out_shapes = (jax.ShapeDtypeStruct((B, T, S), F32),
                  jax.ShapeDtypeStruct((B, T, Hd), BF16))
    return pl.pallas_call(
        attn_kernel,
        grid=(T // Tc,),
        in_specs=in_specs,
        out_specs=out_specs,
        out_shape=out_shapes,
        compiler_params=pltpu.CompilerParams(
            dimension_semantics=("parallel",),
            vmem_limit_bytes=_VMEM_LIMIT),
    )(h_all, *consts)


# --------------------------------------- vocab projection + softmax (V-tiled) --
def vocab_stats_kernel(hid1_ref, w2_ref, b2_ref, m_ref, l_ref, m_sc, l_sc):
    """Pass 1: online softmax statistics (row max / sum-exp) over V tiles."""
    j = pl.program_id(1)

    @pl.when(j == 0)
    def _():
        m_sc[...] = jnp.full(m_sc.shape, -jnp.inf, m_sc.dtype)
        l_sc[...] = jnp.zeros(l_sc.shape, l_sc.dtype)

    logits = (jnp.dot(hid1_ref[...], w2_ref[...],
                      preferred_element_type=jnp.float32) + b2_ref[...])
    tmax = jnp.max(logits, axis=-1, keepdims=True)
    m_new = jnp.maximum(m_sc[...], tmax)
    l_sc[...] = (l_sc[...] * jnp.exp(m_sc[...] - m_new)
                 + jnp.sum(jnp.exp(logits - m_new), axis=-1, keepdims=True))
    m_sc[...] = m_new

    @pl.when(j == pl.num_programs(1) - 1)
    def _():
        m_ref[...] = m_sc[...]
        l_ref[...] = l_sc[...]


def vocab_dist_kernel(hid1_ref, w2_ref, b2_ref, m_ref, l_ref, dist_ref):
    """Pass 2: recompute the logit tile and write the normalized probabilities."""
    logits = (jnp.dot(hid1_ref[...], w2_ref[...],
                      preferred_element_type=jnp.float32) + b2_ref[...])
    inv = 1.0 / l_ref[...]                    # exact normalization for returned dist
    dist_ref[...] = jnp.exp(logits - m_ref[...]) * inv


def run_vocab_softmax(hid1, w2, b2):
    N, Hd = hid1.shape
    V = w2.shape[1]
    TR = _pick_tile(N, (512, 256, 128, 64, 32, 16, 8))
    TV = _pick_tile(V, (2048, 1024, 512, 256, 128))
    nR, nV = N // TR, V // TV

    row_spec = pl.BlockSpec((TR, Hd), lambda i, j: (i, 0))
    w2_spec = pl.BlockSpec((Hd, TV), lambda i, j: (0, j))
    b2_spec = pl.BlockSpec((1, TV), lambda i, j: (0, j))
    ml_spec = pl.BlockSpec((TR, 1), lambda i, j: (i, 0))

    m, l = pl.pallas_call(
        vocab_stats_kernel,
        grid=(nR, nV),
        in_specs=[row_spec, w2_spec, b2_spec],
        out_specs=(ml_spec, ml_spec),
        out_shape=(jax.ShapeDtypeStruct((N, 1), F32),
                   jax.ShapeDtypeStruct((N, 1), F32)),
        scratch_shapes=[pltpu.VMEM((TR, 1), F32), pltpu.VMEM((TR, 1), F32)],
        compiler_params=pltpu.CompilerParams(
            dimension_semantics=("parallel", "arbitrary"),
            vmem_limit_bytes=_VMEM_LIMIT),
    )(hid1, w2, b2)

    dist = pl.pallas_call(
        vocab_dist_kernel,
        grid=(nR, nV),
        in_specs=[row_spec, w2_spec, b2_spec, ml_spec, ml_spec],
        out_specs=pl.BlockSpec((TR, TV), lambda i, j: (i, j)),
        out_shape=jax.ShapeDtypeStruct((N, V), F32),
        compiler_params=pltpu.CompilerParams(
            dimension_semantics=("parallel", "parallel"),
            vmem_limit_bytes=_VMEM_LIMIT),
    )(hid1, w2, b2, m, l)
    return dist


# ---------------------------------------------------------------- full model --
def seq2seq_forward(params, src, src_lens, trg, src_oov, max_num_oov, src_mask,
                    topic_represent=None, bos_idx=2):
    """Mirrors Seq2SeqModel.forward for the configuration documented above."""
    del src_oov, max_num_oov, topic_represent  # copy/topic branches disabled
    B, S = src.shape
    T = trg.shape[1]
    He = params['enc_whh_f'].shape[0]
    Hd = params['dec_whh'].shape[0]
    E = params['enc_emb'].shape[1]

    # --- encoder -------------------------------------------------------------
    x_t = jnp.take(params['enc_emb'], jnp.transpose(src), axis=0).astype(BF16)  # [S,B,E]
    w_enc = jnp.stack([params['enc_wih_f'], params['enc_wih_b']], 0).astype(BF16)  # [2,E,3He]
    b_enc = jnp.stack([params['enc_bih_f'], params['enc_bih_b']], 0)               # [2,1,3He]
    gi_enc = run_input_proj(x_t.reshape(S * B, E), w_enc,
                            b_enc).reshape(2, S, B, 3 * He)

    enc_mask = (jnp.arange(S)[:, None] < src_lens[None, :]).astype(F32)[:, :, None]
    whh = jnp.stack([params['enc_whh_f'], params['enc_whh_b']], 0).astype(BF16)
    bhh = jnp.stack([params['enc_bhh_f'], params['enc_bhh_b']], 0)
    mem_dsbh, h_fin = run_encoder(gi_enc, enc_mask, whh, bhh)   # bf16 [2,S,B,He], f32 [2,B,He]

    # memory bank in the batch-major layout attention wants, bf16 for the MXU
    memory_bank = jnp.transpose(mem_dsbh, (2, 1, 0, 3)).reshape(B, S, 2 * He)
    # pykp: cat((final_state[-1], final_state[-2])) == [bwd ; fwd]
    encoder_final_state = jnp.concatenate([h_fin[1], h_fin[0]], axis=-1)    # [B,2He]

    # --- decoder -------------------------------------------------------------
    # teacher forcing, y_0 = BOS, y_t = trg[:, t-1]
    y_ids = jnp.concatenate(
        [jnp.full((B, 1), bos_idx, dtype=trg.dtype), trg[:, :-1]], axis=1)
    y_t = jnp.take(params['dec_emb'], jnp.transpose(y_ids), axis=0).astype(BF16)  # [T,B,E]
    gi_dec = run_input_proj(y_t.reshape(T * B, E),
                            params['dec_wih'][None].astype(BF16),
                            params['dec_bih'][None])[0].reshape(T, B, 3 * Hd)

    # serial part: only the GRU recurrence (attention hoisted out)
    h_all = run_dec_gru(gi_dec, encoder_final_state,
                        params['bridge_w'].astype(BF16), params['bridge_b'],
                        params['dec_whh'].astype(BF16), params['dec_bhh'])      # [T,B,Hd] f32

    src_mask3 = src_mask.astype(F32)[:, None, :]                               # [B,1,S]
    attention_dist_all, hid1_bt = run_attention(
        h_all, memory_bank, src_mask3,
        params['attn_w'].astype(BF16),
        params['w1c'].astype(BF16), params['w1h'].astype(BF16), params['b1'])

    dist = run_vocab_softmax(hid1_bt.reshape(B * T, Hd),
                             params['w2'].astype(BF16), params['b2'])
    decoder_dist_all = dist.reshape(B, T, -1)                                  # [B,T,V]

    h_t_next = h_all[T - 1][None, :, :]                                        # [1,B,Hd]
    coverage_all = None                                                        # coverage_attn=False
    return (decoder_dist_all, h_t_next, attention_dist_all, encoder_final_state,
            coverage_all, None, None, None)


# ----------------------------------------------------------------- params ----
def init_params(key, vocab_size, emb_dim, enc_size, dec_size):
    ks = jax.random.split(key, 22)
    u = lambda k, shape, s=0.1: jax.random.uniform(k, shape, F32, -s, s)
    M = 2 * enc_size  # num_directions * encoder_size
    p = {}
    p['enc_emb'] = u(ks[0], (vocab_size, emb_dim))          # uniform(-0.1, 0.1)
    p['dec_emb'] = u(ks[1], (vocab_size, emb_dim))
    # encoder bidirectional GRU (weights stored transposed: [in, 3H], gates r,z,n)
    p['enc_wih_f'] = u(ks[2], (emb_dim, 3 * enc_size))
    p['enc_whh_f'] = u(ks[3], (enc_size, 3 * enc_size))
    p['enc_bih_f'] = u(ks[4], (1, 3 * enc_size))
    p['enc_bhh_f'] = u(ks[5], (1, 3 * enc_size))
    p['enc_wih_b'] = u(ks[6], (emb_dim, 3 * enc_size))
    p['enc_whh_b'] = u(ks[7], (enc_size, 3 * enc_size))
    p['enc_bih_b'] = u(ks[8], (1, 3 * enc_size))
    p['enc_bhh_b'] = u(ks[9], (1, 3 * enc_size))
    # bridge = 'dense': Linear(2*He -> Hd)
    p['bridge_w'] = u(ks[10], (M, dec_size))
    p['bridge_b'] = u(ks[11], (1, dec_size))
    # decoder GRU (1 layer)
    p['dec_wih'] = u(ks[12], (emb_dim, 3 * dec_size))
    p['dec_whh'] = u(ks[13], (dec_size, 3 * dec_size))
    p['dec_bih'] = u(ks[14], (1, 3 * dec_size))
    p['dec_bhh'] = u(ks[15], (1, 3 * dec_size))
    # attention 'general': Linear(Hd -> M, bias=False)
    p['attn_w'] = u(ks[16], (dec_size, M))
    # vocab_dist_linear_1: Linear(Hd + M -> Hd), split over [context ; h]
    p['w1c'] = u(ks[17], (M, dec_size))
    p['w1h'] = u(ks[18], (dec_size, dec_size))
    p['b1'] = u(ks[19], (1, dec_size))
    # vocab_dist_linear_2: Linear(Hd -> V)
    p['w2'] = u(ks[20], (dec_size, vocab_size))
    p['b2'] = u(ks[21], (1, vocab_size))
    return p


if __name__ == "__main__":
    B, S, T = 2, 8, 5
    V, E, He, Hd = 50, 16, 16, 32
    BOS_IDX = 2

    key = jax.random.PRNGKey(0)
    kp, k1, k2 = jax.random.split(key, 3)
    params = init_params(kp, V, E, He, Hd)

    src = jax.random.randint(k1, (B, S), 4, V, dtype=jnp.int32)
    trg = jax.random.randint(k2, (B, T), 4, V, dtype=jnp.int32)
    src_lens = jnp.array([S, 5], dtype=jnp.int32)
    src_mask = (jnp.arange(S)[None, :] < src_lens[:, None]).astype(F32)
    src_oov = src          # copy_attention disabled
    max_num_oov = 0

    outs = seq2seq_forward(params, src, src_lens, trg, src_oov, max_num_oov,
                           src_mask, topic_represent=None, bos_idx=BOS_IDX)
    decoder_dist_all, h_t_next, attention_dist_all, encoder_final_state = outs[:4]
    jax.block_until_ready(decoder_dist_all)
    jax.block_until_ready(attention_dist_all)
    jax.block_until_ready(h_t_next)

    assert decoder_dist_all.shape == (B, T, V)
    assert attention_dist_all.shape == (B, T, S)
    assert encoder_final_state.shape == (B, 2 * He)
    assert h_t_next.shape == (1, B, Hd)
    # distributions sum to ~1 (bf16 MXU operands -> loose tolerance)
    assert jnp.allclose(jnp.sum(decoder_dist_all, axis=-1), 1.0, atol=1e-2)
    assert jnp.allclose(jnp.sum(attention_dist_all, axis=-1), 1.0, atol=1e-2)
    assert bool(jnp.all(jnp.isfinite(decoder_dist_all)))

    print("KERNEL_OK")
</pallas_src>

<mosaic_0001>
module attributes {stable_mosaic.version = 11 : i64} {
  func.func @linear_kernel(%arg0: i32, %arg1: i32, %arg2: memref<16x16xbf16, #tpu.memory_space<vmem>>, %arg3: memref<1x16x48xbf16, #tpu.memory_space<vmem>>, %arg4: memref<1x1x48xf32, #tpu.memory_space<vmem>>, %arg5: memref<1x16x48xf32, #tpu.memory_space<vmem>>) attributes {dimension_semantics = [#tpu.dimension_semantics<parallel>, #tpu.dimension_semantics<parallel>], iteration_bounds = array<i64: 2, 1>, scalar_prefetch = 0 : i64, scratch_operands = 0 : i64, tpu.core_type = #tpu.core_type<tc>, window_params = [{transform_indices = @transform_0, window_bounds = array<i64: 16, 16>}, {transform_indices = @transform_1, window_bounds = array<i64: 1, 16, 48>}, {transform_indices = @transform_2, window_bounds = array<i64: 1, 1, 48>}, {transform_indices = @transform_3, window_bounds = array<i64: 1, 16, 48>}]} {
    %c0 = arith.constant 0 : index
    %c0_0 = arith.constant 0 : index
    %0 = vector.load %arg2[%c0, %c0_0] : memref<16x16xbf16, #tpu.memory_space<vmem>>, vector<16x16xbf16>
    %c0_1 = arith.constant 0 : index
    %c0_2 = arith.constant 0 : index
    %c0_3 = arith.constant 0 : index
    %1 = vector.load %arg3[%c0_1, %c0_2, %c0_3] : memref<1x16x48xbf16, #tpu.memory_space<vmem>>, vector<1x16x48xbf16>
    %2 = vector.shape_cast %1 : vector<1x16x48xbf16> to vector<16x48xbf16>
    %cst = arith.constant dense<0.000000e+00> : vector<16x48xf32>
    %3 = tpu.matmul %0, %2, %cst {dimension_numbers = #tpu.dot_dimension_numbers<[1], [0], [0], [1], [0, 0, 1, 1], [], []>} : vector<16x16xbf16>, vector<16x48xbf16>, vector<16x48xf32> -> vector<16x48xf32>
    %c0_4 = arith.constant 0 : index
    %c0_5 = arith.constant 0 : index
    %c0_6 = arith.constant 0 : index
    %4 = vector.load %arg4[%c0_4, %c0_5, %c0_6] : memref<1x1x48xf32, #tpu.memory_space<vmem>>, vector<1x1x48xf32>
    %5 = vector.shape_cast %4 : vector<1x1x48xf32> to vector<1x48xf32>
    %6 = vector.broadcast %5 : vector<1x48xf32> to vector<16x48xf32>
    %7 = arith.addf %3, %6 : vector<16x48xf32>
    %c0_7 = arith.constant 0 : index
    %c0_8 = arith.constant 0 : index
    %c0_9 = arith.constant 0 : index
    %8 = vector.load %arg5[%c0_7, %c0_8, %c0_9] : memref<1x16x48xf32, #tpu.memory_space<vmem>>, vector<1x16x48xf32>
    %9 = vector.shape_cast %8 : vector<1x16x48xf32> to vector<16x48xf32>
    %10 = vector.shape_cast %7 : vector<16x48xf32> to vector<1x16x48xf32>
    tpu.vector_store %arg5[%c0_7, %c0_8, %c0_9], %10 {strides = array<i32>} : memref<1x16x48xf32, #tpu.memory_space<vmem>>, vector<1x16x48xf32>,
    return
  }
  func.func @transform_0(%arg0: i32, %arg1: i32) -> (i32, i32) {
    %c0_i32 = arith.constant 0 : i32
    %c0_i32_0 = arith.constant 0 : i32
    return %arg1, %c0_i32 : i32, i32
  }
  func.func @transform_1(%arg0: i32, %arg1: i32) -> (i32, i32, i32) {
    %c0_i32 = arith.constant 0 : i32
    %c0_i32_0 = arith.constant 0 : i32
    %c0_i32_1 = arith.constant 0 : i32
    return %arg0, %c0_i32, %c0_i32_0 : i32, i32, i32
  }
  func.func @transform_2(%arg0: i32, %arg1: i32) -> (i32, i32, i32) {
    %c0_i32 = arith.constant 0 : i32
    %c0_i32_0 = arith.constant 0 : i32
    %c0_i32_1 = arith.constant 0 : i32
    return %arg0, %c0_i32, %c0_i32_0 : i32, i32, i32
  }
  func.func @transform_3(%arg0: i32, %arg1: i32) -> (i32, i32, i32) {
    %c0_i32 = arith.constant 0 : i32
    %c0_i32_0 = arith.constant 0 : i32
    return %arg0, %arg1, %c0_i32 : i32, i32, i32
  }
}

</mosaic_0001>

<llo_original>
// kernel: tpu_custom_call.1
$region0: #{tpu_custom_call.1}
  #allocation0 [shape = 'u32[]', space=smem, size = 0x4, offset = 0x4, fixed_abs, tag = 'smem constant byte address 0x4 - core index']
  #allocation1 [shape = 'u32[144,128]{1,0:T(1,128)}', space=vmem, size = 0x12000, scoped, tag = 'internal scratch']
  %s0 = inlined_call_operand.hbm [shape: bf16[16,16], index: 0, kind: input, shape index: {}]
  %s1 = inlined_call_operand.hbm [shape: bf16[2,16,48], index: 1, kind: input, shape index: {}]
  %s2 = inlined_call_operand.hbm [shape: f32[2,1,48], index: 2, kind: input, shape index: {}]
  %s3 = inlined_call_operand.hbm [shape: f32[2,16,48], index: 3, kind: output, shape index: {}]
  %s4 = sld [smem:[#allocation0]]
  $region57: #{tpu_custom_call.1} parent=0
    _
  %s6 = ssub.s32 1, %s4
  %s7 = scalar_select 0, %s6, %s4
  $region1: #{tpu_custom_call.1} parent=0
    #allocation2 [shape = 'u8[4096]{0}', space=vmem, size = 0x1000, scoped, tag = 'input window, operand 0, single buffered']
    #allocation3 [shape = 's32[2]{0}', space=sflag, size = 0x8, scoped, tag = 'scoped memory for tpu_custom_call.1']
    #allocation4 [shape = 's32[2]{0}', space=sflag, size = 0x8, scoped, tag = 'scoped memory for tpu_custom_call.1']
    #allocation5 [shape = 'u8[8192]{0}', space=vmem, size = 0x2000, scoped, tag = 'input window, operand 1']
    #allocation6 [shape = 's32[2]{0}', space=sflag, size = 0x8, scoped, tag = 'scoped memory for tpu_custom_call.1']
    #allocation7 [shape = 'u8[1024]{0}', space=vmem, size = 0x400, scoped, tag = 'input window, operand 2']
    #allocation8 [shape = 'u8[16384]{0}', space=vmem, size = 0x4000, scoped, tag = 'output window, operand 0']
    %8 = vsyncpa [#allocation3], 0
    %9 = vsyncpa [#allocation6], 0
    %s10 = scalar_lea.sflag [#allocation6], 1
    %11 = vsyncpa %s10, 0
    %12 = vsyncpa [#allocation4], 0
    %s13 = scalar_lea.sflag [#allocation4], 1
    %14 = vsyncpa %s13, 0
    loop: start=0, step=1, limit=4
    $region2: #{tpu_custom_call.1} parent=1 // loop_pre_header
      _
    $region3: #{tpu_custom_call.1} parent=1 // loop_header
      %s16 = sphi 0, %s20
      %p17 = scmp.ge.s32.totalorder %s16, 4
      %s23 = sphi 0, %s35
      %s24 = sphi 0, %s31
      %s25 = sphi 0, %s23
      %s26 = sphi 0, %s24
      %s27 = sphi 0, %s25
      %s28 = sphi 0, %s26
      %s38 = sphi 0, %s40
      %s41 = sphi 0, %s38
      %s42 = sphi 0, %s41
      %s58 = sphi 0, %s42
      %s64 = sphi 0, %s66
      %s67 = sphi 0, %s64
      %s68 = sphi 0, %s67
      %s84 = sphi 0, %s68
      %s90 = sphi 0, %s92
      %s93 = sphi 0, %s90
      %s94 = sphi 0, %s93
      %s110 = sphi 0, %s94
      %s118 = sphi 0, %s120
      %s121 = sphi 0, %s118
      %s122 = sphi 0, %s121
      %s138 = sphi 0, %s122
    $region4: #{tpu_custom_call.1} parent=1 // loop_header_branch
      %19 = sbr.rel (%p17) target = $region8
    $region5: #{tpu_custom_call.1} parent=1 // loop_body
      %s21 = ssub.s32 %s16, 1
      %s22 = ssub.s32 %s16, 2
      %s29 = sadd.s32 1, %s24
      %p30 = scmp.ge.s32.totalorder %s29, 1
      %s31 = scalar_select %p30, 0, %s29
      %s32 = sadd.s32 1, %s23
      %s33 = scalar_select %p30, %s32, %s23
      %p34 = scmp.ge.s32.totalorder %s33, 2
      %s35 = scalar_select %p34, 0, %s33
      %s36 = ssub.s32 %s24, %s31
      %p37 = scmp.eq.s32.totalorder %s36, 0
      %s39 = sadd.s32 %s38, 1
      %s40 = scalar_select %p37, %s38, %s39
      %p43 = pneg %p37
      %p44 = scmp.eq.s32.totalorder %s16, 1
      %p45 = por %p43, %p44
      %p46 = scmp.ne.s32.totalorder %s38, %s41
      %p47 = scmp.eq.s32.totalorder %s16, 0
      %p48 = por %p46, %p47
      %p49 = scmp.ne.s32.totalorder %s38, %s41
      %p50 = scmp.eq.s32.totalorder %s21, 1
      %p51 = por %p49, %p50
      %p52 = scmp.ne.s32.totalorder %s41, %s42
      %p53 = scmp.eq.s32.totalorder %s21, 0
      %p54 = por %p52, %p53
      %p55 = scmp.ne.s32.totalorder %s41, %s42
      %p56 = scmp.eq.s32.totalorder %s22, 1
      %p57 = por %p55, %p56
      %p59 = scmp.ne.s32.totalorder %s42, %s58
      %p60 = scmp.eq.s32.totalorder %s22, 0
      %p61 = por %p59, %p60
      %s62 = ssub.s32 %s23, %s35
      %p63 = scmp.eq.s32.totalorder %s62, 0
      %s65 = sadd.s32 %s64, 1
      %s66 = scalar_select %p63, %s64, %s65
      %p69 = pneg %p63
      %p70 = scmp.eq.s32.totalorder %s16, 1
      %p71 = por %p69, %p70
      %p72 = scmp.ne.s32.totalorder %s64, %s67
      %p73 = scmp.eq.s32.totalorder %s16, 0
      %p74 = por %p72, %p73
      %p75 = scmp.ne.s32.totalorder %s64, %s67
      %p76 = scmp.eq.s32.totalorder %s21, 1
      %p77 = por %p75, %p76
      %p78 = scmp.ne.s32.totalorder %s67, %s68
      %p79 = scmp.eq.s32.totalorder %s21, 0
      %p80 = por %p78, %p79
      %p81 = scmp.ne.s32.totalorder %s67, %s68
      %p82 = scmp.eq.s32.totalorder %s22, 1
      %p83 = por %p81, %p82
      %p85 = scmp.ne.s32.totalorder %s68, %s84
      %p86 = scmp.eq.s32.totalorder %s22, 0
      %p87 = por %p85, %p86
      %s88 = ssub.s32 %s23, %s35
      %p89 = scmp.eq.s32.totalorder %s88, 0
      %s91 = sadd.s32 %s90, 1
      %s92 = scalar_select %p89, %s90, %s91
      %p95 = pneg %p89
      %p96 = scmp.eq.s32.totalorder %s16, 1
      %p97 = por %p95, %p96
      %p98 = scmp.ne.s32.totalorder %s90, %s93
      %p99 = scmp.eq.s32.totalorder %s16, 0
      %p100 = por %p98, %p99
      %p101 = scmp.ne.s32.totalorder %s90, %s93
      %p102 = scmp.eq.s32.totalorder %s21, 1
      %p103 = por %p101, %p102
      %p104 = scmp.ne.s32.totalorder %s93, %s94
      %p105 = scmp.eq.s32.totalorder %s21, 0
      %p106 = por %p104, %p105
      %p107 = scmp.ne.s32.totalorder %s93, %s94
      %p108 = scmp.eq.s32.totalorder %s22, 1
      %p109 = por %p107, %p108
      %p111 = scmp.ne.s32.totalorder %s94, %s110
      %p112 = scmp.eq.s32.totalorder %s22, 0
      %p113 = por %p111, %p112
      %s114 = ssub.s32 %s23, %s35
      %s115 = ssub.s32 %s24, %s31
      %s116 = sor.u32 %s114, %s115
      %p117 = scmp.eq.s32.totalorder %s116, 0
      %s119 = sadd.s32 %s118, 1
      %s120 = scalar_select %p117, %s118, %s119
      %p123 = pneg %p117
      %p124 = scmp.eq.s32.totalorder %s16, 1
      %p125 = por %p123, %p124
      %p126 = scmp.ne.s32.totalorder %s118, %s121
      %p127 = scmp.eq.s32.totalorder %s16, 0
      %p128 = por %p126, %p127
      %p129 = scmp.ne.s32.totalorder %s118, %s121
      %p130 = scmp.eq.s32.totalorder %s21, 1
      %p131 = por %p129, %p130
      %p132 = scmp.ne.s32.totalorder %s121, %s122
      %p133 = scmp.eq.s32.totalorder %s21, 0
      %p134 = por %p132, %p133
      %p135 = scmp.ne.s32.totalorder %s121, %s122
      %p136 = scmp.eq.s32.totalorder %s22, 1
      %p137 = por %p135, %p136
      %p139 = scmp.ne.s32.totalorder %s122, %s138
      %p140 = scmp.eq.s32.totalorder %s22, 0
      %p141 = por %p139, %p140
      %p142 = scmp.le.s32.totalorder 1, %s16
      %p143 = scmp.lt.s32.totalorder %s16, 3
      %p144 = pnand %p142, %p143
      %p145 = pneg %p144
      // Predicated region
      $region9: #{tpu_custom_call.1} parent=5 // pred_check
        _
      $region10: #{tpu_custom_call.1} parent=5 // pred_check_branch
        %147 = sbr.rel (%p144) target = $region12
      $region11: #{tpu_custom_call.1} parent=5 // pred_region
        %s148 = ssub.s32 %s16, 1
        // Predicated region
        $region13: #{tpu_custom_call.1} parent=11 // pred_check
          %p149 = pneg %p54
        $region14: #{tpu_custom_call.1} parent=11 // pred_check_branch
          %151 = sbr.rel (%p149) target = $region16
        $region15: #{tpu_custom_call.1} parent=11 // pred_region
          %s152 = smul.u32 2, %s26
          %s154 = ssub.s32 128, 128
          %155 = vsyncadd [#allocation3], %s154
          %s156 = smul.addr %s152, 64
          %s157 = scalar_lea.hbm %s0, %s156
          %s158 = sshll.u32 [#allocation2], 4
          %s159 = int_to_ptr.vmem [resolvable:$true] %s158
          %164 = dma.hbm_to_vmem [thread:$0]  %s157, 128, %s159, [#allocation3], 64, 64, 4
        $region16: #{tpu_custom_call.1} parent=11 // pred_fallthru
          _
      $region12: #{tpu_custom_call.1} parent=5 // pred_fallthru
        _
      %p165 = scmp.lt.s32.totalorder %s16, 2
      // Predicated region
      $region17: #{tpu_custom_call.1} parent=5 // pred_check
        %p166 = pneg %p165
      $region18: #{tpu_custom_call.1} parent=5 // pred_check_branch
        %168 = sbr.rel (%p166) target = $region20
      $region19: #{tpu_custom_call.1} parent=5 // pred_region
        // Predicated region
        $region21: #{tpu_custom_call.1} parent=19 // pred_check
          %p169 = pneg %p74
        $region22: #{tpu_custom_call.1} parent=19 // pred_check_branch
          %171 = sbr.rel (%p169) target = $region24
        $region23: #{tpu_custom_call.1} parent=19 // pred_region
          %s172 = sand.u32 %s16, 1
          %s173 = scalar_lea.sflag [#allocation6], %s172
          %s174 = sand.u32 %s64, 1
          %s175 = smul.addr %s174, 8
          %s176 = scalar_lea.vmem [#allocation5], %s175
          %s178 = ssub.s32 128, 128
          %179 = vsyncadd %s173, %s178
          %s180 = smul.addr %s23, 2
          %s181 = smul.addr %s180, 64
          %s182 = scalar_lea.hbm %s1, %s181
          %s183 = sshll.u32 %s176, 4
          %s184 = int_to_ptr.vmem [resolvable:$true] %s183
          %189 = dma.hbm_to_vmem [thread:$0]  %s182, 128, %s184, %s173, 64, 64, 4
        $region24: #{tpu_custom_call.1} parent=19 // pred_fallthru
          _
        // Predicated region
        $region25: #{tpu_custom_call.1} parent=19 // pred_check
          %p190 = pneg %p100
        $region26: #{tpu_custom_call.1} parent=19 // pred_check_branch
          %192 = sbr.rel (%p190) target = $region28
        $region27: #{tpu_custom_call.1} parent=19 // pred_region
          %s193 = sand.u32 %s16, 1
          %s194 = scalar_lea.sflag [#allocation6], %s193
          %s195 = sand.u32 %s90, 1
          %s196 = scalar_lea.vmem [#allocation7], %s195
          %s198 = ssub.s32 16, 16
          %199 = vsyncadd %s194, %s198
          %s200 = smul.addr %s23, 16
          %s201 = scalar_lea.hbm %s2, %s200
          %s203 = sshll.u32 %s196, 4
          %s204 = int_to_ptr.vmem [resolvable:$true] %s203
          %206 = dma.hbm_to_vmem [thread:$0]  %s201, 16, %s204, %s194
        $region28: #{tpu_custom_call.1} parent=19 // pred_fallthru
          _
      $region20: #{tpu_custom_call.1} parent=5 // pred_fallthru
        _
      %p207 = scmp.le.s32.totalorder 1, %s16
      %p208 = scmp.lt.s32.totalorder %s16, 3
      %p209 = pnand %p207, %p208
      %p210 = pneg %p209
      // Predicated region
      $region29: #{tpu_custom_call.1} parent=5 // pred_check
        _
      $region30: #{tpu_custom_call.1} parent=5 // pred_check_branch
        %212 = sbr.rel (%p209) target = $region32
      $region31: #{tpu_custom_call.1} parent=5 // pred_region
        %s213 = ssub.s32 %s16, 1
        // Predicated region
        $region33: #{tpu_custom_call.1} parent=31 // pred_check
          %p214 = pneg %p54
        $region34: #{tpu_custom_call.1} parent=31 // pred_check_branch
          %216 = sbr.rel (%p214) target = $region36
        $region35: #{tpu_custom_call.1} parent=31 // pred_region
          %217 = dma.done [#allocation3], 128
        $region36: #{tpu_custom_call.1} parent=31 // pred_fallthru
          _
        %s218 = sand.u32 %s21, 1
        %s219 = scalar_lea.sflag [#allocation6], %s218
        %s220 = sand.u32 %s67, 1
        %s221 = smul.addr %s220, 8
        %s222 = scalar_lea.vmem [#allocation5], %s221
        // Predicated region
        $region37: #{tpu_custom_call.1} parent=31 // pred_check
          %p223 = pneg %p80
        $region38: #{tpu_custom_call.1} parent=31 // pred_check_branch
          %225 = sbr.rel (%p223) target = $region40
        $region39: #{tpu_custom_call.1} parent=31 // pred_region
          %226 = dma.done %s219, 128
        $region40: #{tpu_custom_call.1} parent=31 // pred_fallthru
          _
        %s227 = sand.u32 %s21, 1
        %s228 = scalar_lea.sflag [#allocation6], %s227
        %s229 = sand.u32 %s93, 1
        %s230 = scalar_lea.vmem [#allocation7], %s229
        // Predicated region
        $region41: #{tpu_custom_call.1} parent=31 // pred_check
          %p231 = pneg %p106
        $region42: #{tpu_custom_call.1} parent=31 // pred_check_branch
          %233 = sbr.rel (%p231) target = $region44
        $region43: #{tpu_custom_call.1} parent=31 // pred_region
          %234 = dma.done %s228, 16
        $region44: #{tpu_custom_call.1} parent=31 // pred_fallthru
          _
        %p235 = pneg %p54
        %p236 = pneg %p51
        %s237 = sand.u32 %s21, 1
        %s238 = scalar_lea.sflag [#allocation6], %s237
        %s239 = sand.u32 %s67, 1
        %s240 = smul.addr %s239, 8
        %s241 = scalar_lea.vmem [#allocation5], %s240
        %p242 = pneg %p80
        %p243 = pneg %p77
        %s244 = sand.u32 %s21, 1
        %s245 = scalar_lea.sflag [#allocation6], %s244
        %s246 = sand.u32 %s93, 1
        %s247 = scalar_lea.vmem [#allocation7], %s246
        %p248 = pneg %p106
        %p249 = pneg %p103
        %p250 = pneg %p134
        %p251 = pneg %p131
        %s252 = sand.u32 %s121, 1
        %s253 = scalar_lea.sflag [#allocation4], %s252
        %s254 = sand.u32 %s121, 1
        %s255 = smul.addr %s254, 16
        %s256 = scalar_lea.vmem [#allocation8], %s255
        %s257 = smul.u32 2, %s26
        %s258 = smul.u32 2, %s26
        %v260 = vld [vmem:[#allocation2] sm:$0xf]
        %v261 = vld [vmem:[#allocation2 + $0x4] sm:$0xf]
        %v262 = vld [vmem:[%s222] sm:$0xf]
        %v263 = vld [vmem:[%s222 + $0x4] sm:$0xf]
        %v264 = vld [vmem:[%s230] sm:$0x1]
        %v266 = vlaneseq
        %v267 = vshrl.u32 %v266, 7
        %v268 = vsub.s32 0, %v267
        %v269 = vrot.slane %v264, %v268
        %v273 = vunpack.c.l.b16 %v260
        %v274 = vunpack.c.l.b16 %v261
        %v275 = vpack.c.b16 %v274, %v273
        %v278 = vunpack.c.l.b16 %v262
        %v279 = vunpack.c.l.b16 %v263
        %v280 = vpack.c.b16 %v279, %v278
        %vm282 = vcmask 130048
        %v284 = vsel %vm282, %v275, 0
        %286 = vmatprep.subr.bf16.mxu0 0
        %287 = vmatpush1.bf16.msra.mxu0 %v280
        %288 = vmatprep.subr.bf16.mxu0 0
        %289 = vmatpush1.bf16.msra.mxu0 0
        %290 = vmatprep.subr.bf16.mxu0 0
        %291 = vmatpush1.bf16.msra.mxu0 0
        %292 = vmatprep.subr.bf16.mxu0 0
        %293 = vmatpush1.bf16.msra.mxu0 0
        %294 = vmatprep.subr.bf16.mxu0 0
        %295 = vmatpush1.bf16.msra.mxu0 0
        %296 = vmatprep.subr.bf16.mxu0 0
        %297 = vmatpush1.bf16.msra.mxu0 0
        %298 = vmatprep.subr.bf16.mxu0 0
        %299 = vmatpush1.bf16.msra.mxu0 0
        %300 = vmatprep.subr.bf16.mxu0 0
        %301 = vmatpush1.bf16.msra.mxu0 0
        %302 = vmatprep.subr.bf16.mxu0 0
        %303 = vmatpush1.bf16.msra.mxu0 0
        %304 = vmatprep.subr.bf16.mxu0 0
        %305 = vmatpush1.bf16.msra.mxu0 0
        %306 = vmatprep.subr.bf16.mxu0 0
        %307 = vmatpush1.bf16.msra.mxu0 0
        %308 = vmatprep.subr.bf16.mxu0 0
        %309 = vmatpush1.bf16.msra.mxu0 0
        %310 = vmatprep.subr.bf16.mxu0 0
        %311 = vmatpush1.bf16.msra.mxu0 0
        %312 = vmatprep.subr.bf16.mxu0 0
        %313 = vmatpush1.bf16.msra.mxu0 0
        %314 = vmatprep.subr.bf16.mxu0 0
        %315 = vmatpush1.bf16.msra.mxu0 0
        %316 = vmatprep.subr.bf16.mxu0 0
        %317 = vmatpush1.bf16.msra.mxu0 0
        %318 = vmatprep.mubr.bf16.mxu0 0
        %319 = vmatmul.mubr.bf16.gmra.mrb[0].mxu0 %v284
        %v320 = vpop.f32.mrb[0].mxu0
        %v321 = vadd.f32 %v269, %v320
        %v322 = vpop.f32.mrb[0].mxu0
        %v323 = vpop.f32.mrb[0].mxu0
        %v324 = vadd.f32 %v269, %v323
        %v325 = vpop.f32.mrb[0].mxu0
        %326 = vdwg.mxu0
        %vm327 = vcmask 392192
        %328 = vst.msk [vmem:[%s256] sm:$0xff] %vm327, %v321
        %329 = vst.msk [vmem:[%s256 + $0x8] sm:$0xff] %vm327, %v324
        %s330 = sand.u32 %s121, 1
        %s331 = scalar_lea.sflag [#allocation4], %s330
        %s332 = sand.u32 %s121, 1
        %s333 = smul.addr %s332, 16
        %s334 = scalar_lea.vmem [#allocation8], %s333
        // Predicated region
        $region45: #{tpu_custom_call.1} parent=31 // pred_check
          %p335 = pneg %p131
        $region46: #{tpu_custom_call.1} parent=31 // pred_check_branch
          %337 = sbr.rel (%p335) target = $region48
        $region47: #{tpu_custom_call.1} parent=31 // pred_region
          %s338 = smul.u32 2, %s26
          %s340 = ssub.s32 256, 256
          %341 = vsyncadd %s331, %s340
          %s342 = smul.addr %s25, 2
          %s343 = sadd.s32 %s338, %s342
          %s344 = smul.addr %s343, 128
          %s345 = scalar_lea.hbm %s3, %s344
          %s346 = sshll.u32 %s334, 4
          %s347 = int_to_ptr.vmem [resolvable:$true] %s346
          %352 = dma.vmem_to_hbm [thread:$0]  %s347, 256, %s345, %s331, 128, 128, 8
        $region48: #{tpu_custom_call.1} parent=31 // pred_fallthru
          _
      $region32: #{tpu_custom_call.1} parent=5 // pred_fallthru
        _
      %p353 = scmp.le.s32.totalorder 2, %s16
      // Predicated region
      $region49: #{tpu_custom_call.1} parent=5 // pred_check
        %p354 = pneg %p353
      $region50: #{tpu_custom_call.1} parent=5 // pred_check_branch
        %356 = sbr.rel (%p354) target = $region52
      $region51: #{tpu_custom_call.1} parent=5 // pred_region
        %s357 = ssub.s32 %s16, 2
        // Predicated region
        $region53: #{tpu_custom_call.1} parent=51 // pred_check
          %p358 = pneg %p137
        $region54: #{tpu_custom_call.1} parent=51 // pred_check_branch
          %360 = sbr.rel (%p358) target = $region56
        $region55: #{tpu_custom_call.1} parent=51 // pred_region
          %s361 = sand.u32 %s122, 1
          %s362 = scalar_lea.sflag [#allocation4], %s361
          %s363 = sand.u32 %s122, 1
          %s364 = smul.addr %s363, 16
          %s365 = scalar_lea.vmem [#allocation8], %s364
          %366 = dma.done %s362, 256
        $region56: #{tpu_custom_call.1} parent=51 // pred_fallthru
          _
      $region52: #{tpu_custom_call.1} parent=5 // pred_fallthru
        _
    $region6: #{tpu_custom_call.1} parent=1 // loop_footer
      %s20 = sadd.s32 1, %s16
    $region7: #{tpu_custom_call.1} parent=1 // loop_footer_branch
      %15 = sbr.rel target = $region3
    $region8: #{tpu_custom_call.1} parent=1 // loop_exit
      _
    %367 = vsyncpa [#allocation3], 1
    %s368 = scalar_lea.sflag [#allocation3], 1
    %369 = vsyncpa %s368, 1
    %370 = vsyncpa [#allocation6], 1
    %s371 = scalar_lea.sflag [#allocation6], 1
    %372 = vsyncpa %s371, 1
    %373 = vsyncpa [#allocation4], 1
    %s374 = scalar_lea.sflag [#allocation4], 1
    %375 = vsyncpa %s374, 1

</llo_original>
